<compile_context>
chip_gen: v6e
topology: v6e:2x2x1
jax: 0.10.0
libtpu: 0.0.40
codegen_flags: <defaults>
</compile_context>

<pallas_src>
import functools

import jax
import jax.numpy as jnp
from jax import lax
from jax.experimental import pallas as pl
from jax.experimental.pallas import tpu as pltpu


def _round_up(x, m):
    return (x + m - 1) // m * m


def _euclid_partial_kernel(x_ref, t_ref, o_ref, *, tile_n, n_rows, thresh,
                           weight_val):
    """Per-tile partial weighted-Euclidean-norm sum.

    x_ref, t_ref: (tile_n, D) tiles in VMEM (auto-pipelined, native dtype).
    o_ref:        (1, 1)      f32 per-tile partial sum in SMEM.
    """
    i = pl.program_id(0)

    x = x_ref[...].astype(jnp.float32)
    t = t_ref[...].astype(jnp.float32)
    diff = x - t                                             # (tile_n, D) VPU

    # Global row index of every row in this tile (in-kernel weight/tail mask
    # generation -> no extra HBM stream).
    row = i * tile_n + lax.broadcasted_iota(jnp.int32, (tile_n, 1), 0)
    valid = row < n_rows

    # Mask the *diff*, not just the weight: the tail of the last block reads
    # unspecified memory and 0 * NaN/Inf would otherwise corrupt the sum.
    diff = jnp.where(valid, diff, jnp.float32(0.0))

    sq_sum = jnp.sum(diff * diff, axis=1, keepdims=True)     # (tile_n, 1) XLU
    # TODO(synk): guard sqrt(0) with an epsilon / safe-norm if this loss is
    # ever differentiated (forward pass is exact as-is).
    norms = jnp.sqrt(sq_sum)                                 # EUP

    w = jnp.where(row >= thresh, jnp.float32(weight_val), jnp.float32(1.0))

    # Raw partial sum; the mean (divide by the TRUE N) happens in the wrapper.
    o_ref[0, 0] = jnp.sum(w * norms)


def euclidean_distance_loss(inputs, targets, weight=None, camera_nums=0,
                            tile_rows=None):
    """JAX/Pallas equivalent of Euclidean_distance_loss.forward."""
    inputs = jnp.asarray(inputs)
    targets = jnp.asarray(targets)
    if targets.dtype != inputs.dtype:
        common = jnp.promote_types(inputs.dtype, targets.dtype)
        inputs = inputs.astype(common)
        targets = targets.astype(common)
    n, d = inputs.shape
    itemsize = jnp.dtype(inputs.dtype).itemsize

    # Static weight parameters (torch-compat: camera_nums == 0 with a weight
    # sets the whole vector -> threshold 0).
    if weight is None:
        w_val, thresh = 1.0, 0
    else:
        w_val = float(weight)
        thresh = max(0, n - camera_nums) if camera_nums != 0 else 0

    # --- per-generation VMEM budget (lane-padding aware) --------------------
    phys_vmem = 64 * 1024 * 1024                 # v7x per-TC (safest fallback)
    try:
        phys_vmem = int(pltpu.get_tpu_info().vmem_capacity_bytes)
    except Exception:
        pass
    # Double-buffered input working set <= ~60% of physical VMEM (capped), and
    # a scoped-VMEM limit a bit above it for output/scratch headroom.
    ws_budget = min(int(phys_vmem * 0.6), 80 * 1024 * 1024)
    vmem_limit = int(min(phys_vmem, ws_budget + 16 * 1024 * 1024))

    # Real VMEM footprint of one (tile, D) block row: lanes pad to 128.
    lane_row_bytes = _round_up(max(d, 1), 128) * itemsize
    # 2 inputs x 2 pipeline buffers are resident at once.
    max_tile_vmem = max(8, (ws_budget // (2 * 2 * lane_row_bytes)) // 8 * 8)

    if tile_rows is None:
        # Target ~4 MiB of HBM bytes per input block to amortise the ~0.35 us
        # fixed per-step pipeline overhead, clamped by the VMEM budget.
        target_block_bytes = 4 * 1024 * 1024
        tile = max(8, (target_block_bytes // max(d * itemsize, 1)) // 8 * 8)
    else:
        tile = max(8, _round_up(int(tile_rows), 8))
    tile = max(8, min(tile, max_tile_vmem, _round_up(n, 8)))

    # Keep grid >= 2 (ideally >= 4) so both v7x TensorCores get work, but only
    # if each block would still move >= ~1 MiB of HBM bytes.
    if tile_rows is None:
        min_tile = max(8, ((1024 * 1024) // max(d * itemsize, 1)) // 8 * 8)
        for parts in (4, 2):
            cand = max(8, _round_up(pl.cdiv(n, parts), 8))
            if cand >= min_tile:
                tile = min(tile, cand)
                break

    grid = pl.cdiv(n, tile)

    kernel = functools.partial(_euclid_partial_kernel, tile_n=tile, n_rows=n,
                               thresh=thresh, weight_val=w_val)

    partials = pl.pallas_call(
        kernel,
        out_shape=jax.ShapeDtypeStruct((grid, 1), jnp.float32),
        grid=(grid,),
        in_specs=[
            pl.BlockSpec((tile, d), lambda i: (i, 0)),   # inputs  tile
            pl.BlockSpec((tile, d), lambda i: (i, 0)),   # targets tile
        ],
        # One scalar partial per tile -> independent output blocks, so the
        # grid axis is "parallel" (shardable across both v7x TensorCores).
        out_specs=pl.BlockSpec((1, 1), lambda i: (i, 0),
                               memory_space=pltpu.SMEM),
        compiler_params=pltpu.CompilerParams(
            dimension_semantics=("parallel",),
            vmem_limit_bytes=vmem_limit),
    )(inputs, targets)

    # Final reduction + mean over the TRUE number of rows.
    return jnp.sum(partials) / jnp.float32(n)


if __name__ == "__main__":
    key = jax.random.PRNGKey(0)
    k1, k2, k3, k4 = jax.random.split(key, 4)

    # Case 1: small shapes consistent with the module (N rows of D-dim vectors).
    N, D = 8, 32
    inputs = jax.random.normal(k1, (N, D), dtype=jnp.float32)
    targets = jax.random.normal(k2, (N, D), dtype=jnp.float32)
    weight, camera_nums = 2.5, 3

    loss = euclidean_distance_loss(inputs, targets, weight=weight,
                                   camera_nums=camera_nums)
    loss = jax.block_until_ready(loss)

    norms = jnp.linalg.norm(inputs - targets, axis=1)
    w_ref = jnp.ones((N,), jnp.float32).at[-camera_nums:].set(weight)
    ref = jnp.mean(w_ref * norms)
    assert jnp.allclose(loss, ref, rtol=1e-5, atol=1e-5), (loss, ref)

    # weight=None branch.
    loss_nw = jax.block_until_ready(
        euclidean_distance_loss(inputs, targets, weight=None))
    ref_nw = jnp.mean(norms)
    assert jnp.allclose(loss_nw, ref_nw, rtol=1e-5, atol=1e-5), (loss_nw, ref_nw)

    # Case 2: multi-tile grid with a non-multiple row count (exercises the
    # pipelined path, in-kernel weights, and the in-kernel tail masking of the
    # last, partially out-of-range block — no wrapper-side padding anymore).
    N2, D2 = 300, 32
    x2 = jax.random.normal(k3, (N2, D2), dtype=jnp.float32)
    t2 = jax.random.normal(k4, (N2, D2), dtype=jnp.float32)
    loss2 = jax.block_until_ready(
        euclidean_distance_loss(x2, t2, weight=1.5, camera_nums=10,
                                tile_rows=128))
    norms2 = jnp.linalg.norm(x2 - t2, axis=1)
    w2 = jnp.ones((N2,), jnp.float32).at[-10:].set(1.5)
    ref2 = jnp.mean(w2 * norms2)
    assert jnp.allclose(loss2, ref2, rtol=1e-5, atol=1e-5), (loss2, ref2)

    # Case 3: auto tile selection (bytes-targeted path, grid collapses to 1
    # for this small N) — checks the lane-padding-aware sizing end to end.
    loss3 = jax.block_until_ready(
        euclidean_distance_loss(x2, t2, weight=0.5, camera_nums=7))
    w3 = jnp.ones((N2,), jnp.float32).at[-7:].set(0.5)
    ref3 = jnp.mean(w3 * norms2)
    assert jnp.allclose(loss3, ref3, rtol=1e-5, atol=1e-5), (loss3, ref3)

    print("KERNEL_OK")
</pallas_src>

<mosaic_0001>
module attributes {stable_mosaic.version = 11 : i64} {
  func.func @_euclid_partial_kernel(%arg0: i32, %arg1: memref<8x32xf32, #tpu.memory_space<vmem>>, %arg2: memref<8x32xf32, #tpu.memory_space<vmem>>, %arg3: memref<1x1xf32, #tpu.memory_space<smem>>) attributes {dimension_semantics = [#tpu.dimension_semantics<parallel>], iteration_bounds = array<i64: 1>, scalar_prefetch = 0 : i64, scratch_operands = 0 : i64, tpu.core_type = #tpu.core_type<tc>, window_params = [{transform_indices = @transform_0, window_bounds = array<i64: 8, 32>}, {transform_indices = @transform_1, window_bounds = array<i64: 8, 32>}, {transform_indices = @transform_2, window_bounds = array<i64: 1, 1>}]} {
    %c0 = arith.constant 0 : index
    %c0_0 = arith.constant 0 : index
    %0 = vector.load %arg1[%c0, %c0_0] : memref<8x32xf32, #tpu.memory_space<vmem>>, vector<8x32xf32>
    %c0_1 = arith.constant 0 : index
    %c0_2 = arith.constant 0 : index
    %1 = vector.load %arg2[%c0_1, %c0_2] : memref<8x32xf32, #tpu.memory_space<vmem>>, vector<8x32xf32>
    %2 = arith.subf %0, %1 : vector<8x32xf32>
    %c8_i32 = arith.constant 8 : i32
    %3 = arith.muli %arg0, %c8_i32 : i32
    %4 = tpu.iota {dimensions = array<i32: 0>} : vector<8x1xi32>
    %5 = vector.broadcast %3 : i32 to vector<8x1xi32>
    %6 = arith.addi %5, %4 : vector<8x1xi32>
    %c8_i32_3 = arith.constant 8 : i32
    %7 = vector.broadcast %c8_i32_3 : i32 to vector<8x1xi32>
    %8 = arith.cmpi slt, %6, %7 : vector<8x1xi32>
    %cst = arith.constant 0.000000e+00 : f32
    %9 = vector.shape_cast %8 : vector<8x1xi1> to vector<8x1xi1>
    %10 = vector.broadcast %9 : vector<8x1xi1> to vector<8x32xi1>
    %11 = vector.broadcast %cst : f32 to vector<8x32xf32>
    %12 = arith.select %10, %2, %11 : vector<8x32xi1>, vector<8x32xf32>
    %13 = arith.mulf %12, %12 : vector<8x32xf32>
    %cst_4 = arith.constant dense<0.000000e+00> : vector<8xf32>
    %14 = vector.multi_reduction <add>, %13, %cst_4 [1] : vector<8x32xf32> to vector<8xf32>
    %15 = vector.shape_cast %14 : vector<8xf32> to vector<8x1xf32>
    %16 = math.sqrt %15 : vector<8x1xf32>
    %c5_i32 = arith.constant 5 : i32
    %17 = vector.broadcast %c5_i32 : i32 to vector<8x1xi32>
    %18 = arith.cmpi sge, %6, %17 : vector<8x1xi32>
    %cst_5 = arith.constant 2.500000e+00 : f32
    %cst_6 = arith.constant 1.000000e+00 : f32
    %19 = vector.broadcast %cst_5 : f32 to vector<8x1xf32>
    %20 = vector.broadcast %cst_6 : f32 to vector<8x1xf32>
    %21 = arith.select %18, %19, %20 : vector<8x1xi1>, vector<8x1xf32>
    %22 = arith.mulf %21, %16 : vector<8x1xf32>
    %23 = vector.shape_cast %22 : vector<8x1xf32> to vector<1x8x1xf32>
    %cst_7 = arith.constant dense<0.000000e+00> : vector<1xf32>
    %24 = vector.multi_reduction <add>, %23, %cst_7 [1, 2] : vector<1x8x1xf32> to vector<1xf32>
    %25 = vector.shape_cast %24 : vector<1xf32> to vector<1x1x1xf32>
    %26 = vector.extract %25[0, 0, 0] : f32 from vector<1x1x1xf32>
    %c0_8 = arith.constant 0 : index
    %c0_9 = arith.constant 0 : index
    %27 = memref.load %arg3[%c0_8, %c0_9] : memref<1x1xf32, #tpu.memory_space<smem>>
    memref.store %26, %arg3[%c0_8, %c0_9] : memref<1x1xf32, #tpu.memory_space<smem>>
    return
  }
  func.func @transform_0(%arg0: i32) -> (i32, i32) {
    %c0_i32 = arith.constant 0 : i32
    %c0_i32_0 = arith.constant 0 : i32
    return %arg0, %c0_i32 : i32, i32
  }
  func.func @transform_1(%arg0: i32) -> (i32, i32) {
    %c0_i32 = arith.constant 0 : i32
    %c0_i32_0 = arith.constant 0 : i32
    return %arg0, %c0_i32 : i32, i32
  }
  func.func @transform_2(%arg0: i32) -> (i32, i32) {
    %c0_i32 = arith.constant 0 : i32
    %c0_i32_0 = arith.constant 0 : i32
    return %arg0, %c0_i32 : i32, i32
  }
}

</mosaic_0001>

<llo_original>
// kernel: tpu_custom_call.1
$region0: #{tpu_custom_call.1}
  #allocation0 [shape = 'u32[]', space=smem, size = 0x4, offset = 0x4, fixed_abs, tag = 'smem constant byte address 0x4 - core index']
  #allocation1 [shape = 'u32[144,128]{1,0:T(1,128)}', space=vmem, size = 0x12000, scoped, tag = 'internal scratch']
  %s0 = inlined_call_operand.hbm [shape: f32[8,32], index: 0, kind: input, shape index: {}]
  %s1 = inlined_call_operand.hbm [shape: f32[8,32], index: 1, kind: input, shape index: {}]
  %s2 = inlined_call_operand.hbm [shape: f32[1,1], index: 2, kind: output, shape index: {}]
  %s3 = sld [smem:[#allocation0]]
  $region26: #{tpu_custom_call.1} parent=0
    _
  %s5 = ssub.s32 1, %s3
  %s6 = scalar_select 0, %s5, %s3
  $region1: #{tpu_custom_call.1} parent=0
    #allocation2 [shape = 'u8[4096]{0}', space=vmem, size = 0x1000, scoped, tag = 'input window, operand 0, single buffered']
    #allocation3 [shape = 's32[1]{0}', space=sflag, size = 0x4, scoped, tag = 'scoped memory for tpu_custom_call.1']
    #allocation4 [shape = 's32[1]{0}', space=sflag, size = 0x4, scoped, tag = 'scoped memory for tpu_custom_call.1']
    #allocation5 [shape = 'u8[4096]{0}', space=vmem, size = 0x1000, scoped, tag = 'input window, operand 1, single buffered']
    #allocation6 [shape = 's32[1]{0}', space=sflag, size = 0x4, scoped, tag = 'scoped memory for tpu_custom_call.1']
    #allocation7 [shape = 'u8[512]{0}', space=smem, size = 0x200, scoped, tag = 'output window, operand 0, single buffered']
    %7 = vsyncpa [#allocation3], 0
    %8 = vsyncpa [#allocation6], 0
    %9 = vsyncpa [#allocation4], 0
    // Predicated region
    $region2: #{tpu_custom_call.1} parent=1 // pred_check
      _
    $region3: #{tpu_custom_call.1} parent=1 // pred_check_branch
      %11 = sbr.rel (0) target = $region5
    $region4: #{tpu_custom_call.1} parent=1 // pred_region
      %s13 = ssub.s32 128, 128
      %14 = vsyncadd [#allocation3], %s13
      %s16 = sshll.u32 [#allocation2], 4
      %s17 = int_to_ptr.vmem [resolvable:$true] %s16
      %19 = dma.hbm_to_vmem [thread:$0]  %s0, 128, %s17, [#allocation3]
    $region5: #{tpu_custom_call.1} parent=1 // pred_fallthru
      _
    // Predicated region
    $region6: #{tpu_custom_call.1} parent=1 // pred_check
      _
    $region7: #{tpu_custom_call.1} parent=1 // pred_check_branch
      %21 = sbr.rel (0) target = $region9
    $region8: #{tpu_custom_call.1} parent=1 // pred_region
      %s23 = ssub.s32 128, 128
      %24 = vsyncadd [#allocation6], %s23
      %s26 = sshll.u32 [#allocation5], 4
      %s27 = int_to_ptr.vmem [resolvable:$true] %s26
      %29 = dma.hbm_to_vmem [thread:$0]  %s1, 128, %s27, [#allocation6]
    $region9: #{tpu_custom_call.1} parent=1 // pred_fallthru
      _
    // Predicated region
    $region10: #{tpu_custom_call.1} parent=1 // pred_check
      _
    $region11: #{tpu_custom_call.1} parent=1 // pred_check_branch
      %31 = sbr.rel (0) target = $region13
    $region12: #{tpu_custom_call.1} parent=1 // pred_region
      %32 = dma.done [#allocation3], 128
    $region13: #{tpu_custom_call.1} parent=1 // pred_fallthru
      _
    // Predicated region
    $region14: #{tpu_custom_call.1} parent=1 // pred_check
      _
    $region15: #{tpu_custom_call.1} parent=1 // pred_check_branch
      %34 = sbr.rel (0) target = $region17
    $region16: #{tpu_custom_call.1} parent=1 // pred_region
      %35 = dma.done [#allocation6], 128
    $region17: #{tpu_custom_call.1} parent=1 // pred_fallthru
      _
    %v36 = vld [vmem:[#allocation2] sm:$0xff]
    %v37 = vld [vmem:[#allocation5] sm:$0xff]
    %v38 = vsub.f32 %v36, %v37
    %s39 = smul.u32 0, 8
    %v40 = vlaneseq
    %v41 = vshrl.u32 %v40, 7
    %v42 = vstv %s39
    %v43 = vadd.s32 %v42, %v41
    %vm44 = vcmp.lt.s32.totalorder %v43, 8
    %v45 = vsel %vm44, 1, 0
    %vm46 = vcmp.eq.s32.totalorder %v45, 1
    %v47 = vsel %vm46, %v38, 0.0
    %v48 = vmul.f32 %v47, %v47
    %vm49 = vcmask 261120
    %v50 = vsel %vm49, %v48, 0.0
    %51 = vadd.xlane.f32.xlu0 %v50
    %v52 = vpop.xlane.xlu0 %51
    %v53 = vrsqrt.pop %v52
    %v54 = vmul.f32 %v52, %v53
    %vm55 = vcmp.eq.f32.partialorder %v52, inf
    %v56 = vsel %vm55, %v52, %v54
    %vm57 = vcmp.eq.f32.partialorder %v52, 0.0
    %v58 = vand.u32 %v52, 2147483648
    %v59 = vsel %vm57, %v58, %v56
    %vm60 = vcmp.ge.s32.totalorder %v43, 5
    %v61 = vsel %vm60, 2.5, 1.0
    %v62 = vmul.f32 %v61, %v59
    %vm63 = vcmask 7168
    %v64 = vsel %vm63, %v62, 0.0
    %65 = vadd.xlane.f32.xlu0 %v64
    %v66 = vpop.xlane.xlu0 %65
    %v67 = vrot.slane %v66, 4
    %v68 = vadd.f32 %v66, %v67
    %v69 = vrot.slane %v68, 2
    %v70 = vadd.f32 %v68, %v69
    %v71 = vrot.slane %v70, 1
    %v72 = vadd.f32 %v70, %v71
    %s73 = vtos %v72
    %s74 = scalar_lea.smem [#allocation7], 0
    %75 = sst [smem:[%s74]] %s73
    // Predicated region
    $region18: #{tpu_custom_call.1} parent=1 // pred_check
      _
    $region19: #{tpu_custom_call.1} parent=1 // pred_check_branch
      %77 = sbr.rel (0) target = $region21
    $region20: #{tpu_custom_call.1} parent=1 // pred_region
      %s79 = ssub.s32 16, 16
      %80 = vsyncadd [#allocation4], %s79
      %83 = dma.smem_to_hbm [#allocation7], 16, %s2, [#allocation4]
    $region21: #{tpu_custom_call.1} parent=1 // pred_fallthru
      _
    // Predicated region
    $region22: #{tpu_custom_call.1} parent=1 // pred_check
      _
    $region23: #{tpu_custom_call.1} parent=1 // pred_check_branch
      %85 = sbr.rel (0) target = $region25
    $region24: #{tpu_custom_call.1} parent=1 // pred_region
      %86 = dma.done [#allocation4], 16
    $region25: #{tpu_custom_call.1} parent=1 // pred_fallthru
      _
    %87 = sfence
    %88 = vsyncpa [#allocation3], 1
    %89 = vsyncpa [#allocation6], 1
    %90 = vsyncpa [#allocation4], 1

</llo_original>
